<compile_context>
chip_gen: v7x
topology: tpu7x:2x2x1
jax: 0.10.0
libtpu: 0.0.40
codegen_flags: <defaults>
</compile_context>

<pallas_src>
import functools

import jax
import jax.numpy as jnp
from jax.experimental import pallas as pl
from jax.experimental.pallas import tpu as pltpu

LANE = 128
SUBLANE = 8


def _round_up(x, m):
    return ((x + m - 1) // m) * m


def _pad2(x, rows, cols):
    r, c = x.shape
    if r == rows and c == cols:
        return x
    return jnp.pad(x, ((0, rows - r), (0, cols - c)))


# ----------------------------------------------------------------------------
# Kernel: fc1 + ReLU + packed GRUCell + (optional LayerNorm) + q_head, fused.
# Per grid step it sees one (TM, *) row tile of x / h / z and the resident
# (padded) weights.  All dots accumulate in f32; elementwise math is f32.
# ----------------------------------------------------------------------------
def _crnn_kernel(use_layer_norm, inv_h,
                 x_ref, h_ref, z_ref,
                 w1_ref, b1_ref,
                 wg_ref, bg_ref,
                 ln_g_ref, ln_b_ref,
                 wqh_ref, wqz_ref, bq_ref,
                 q_ref, hh_ref,
                 xh_ref):
    hp = hh_ref.shape[-1]          # lane-padded hidden width (multiple of 128)
    cdt = w1_ref.dtype             # compute dtype (f32 or bf16)

    # --- fc1 + ReLU ---------------------------------------------------------
    x = jnp.dot(x_ref[...], w1_ref[...], preferred_element_type=jnp.float32)
    x = jnp.maximum(x + b1_ref[...], 0.0)

    # --- GRUCell: one packed MXU matmul over cat([x, h]) ---------------------
    # Packed weight columns: [ r (W_ir+W_hr) | z (W_iz+W_hz) | n_in | n_hid ].
    xh_ref[:, :hp] = x.astype(cdt)
    xh_ref[:, hp:] = h_ref[...]
    g = jnp.dot(xh_ref[...], wg_ref[...],
                preferred_element_type=jnp.float32) + bg_ref[...]

    r = jax.nn.sigmoid(g[:, 0 * hp:1 * hp])
    zg = jax.nn.sigmoid(g[:, 1 * hp:2 * hp])
    n = jnp.tanh(g[:, 2 * hp:3 * hp] + r * g[:, 3 * hp:4 * hp])
    h_f32 = h_ref[...].astype(jnp.float32)
    hh = (1.0 - zg) * n + zg * h_f32

    hh_ref[...] = hh.astype(hh_ref.dtype)   # returned hidden state is pre-LN

    hq = hh
    if use_layer_norm:
        # Padded columns of hh are exactly zero, so sums over the full padded
        # row equal sums over the real H columns; divide by the real H.
        mu = jnp.sum(hh, axis=-1, keepdims=True) * inv_h
        ex2 = jnp.sum(hh * hh, axis=-1, keepdims=True) * inv_h
        var = ex2 - mu * mu
        hq = ((hh - mu) * jax.lax.rsqrt(var + 1e-5)
              * ln_g_ref[...] + ln_b_ref[...])

    # --- q_head on cat([hq, z], -1) == hq @ Wq_h + z @ Wq_z + bq -------------
    q = (jnp.dot(hq.astype(cdt), wqh_ref[...], preferred_element_type=jnp.float32)
         + jnp.dot(z_ref[...], wqz_ref[...], preferred_element_type=jnp.float32)
         + bq_ref[...])
    q_ref[...] = q.astype(q_ref.dtype)


# ----------------------------------------------------------------------------
# Parameter packing / lane padding (do ONCE, reuse across calls).
# Raw params are stored (in_features, out_features) (transposed vs torch).
# ----------------------------------------------------------------------------
def prepare_params(params, compute_dtype=jnp.float32):
    E, H = params["w1"].shape
    C, A = params["wq_z"].shape
    Ep, Hp = _round_up(E, LANE), _round_up(H, LANE)
    Cp, Ap = _round_up(C, LANE), _round_up(A, LANE)

    f32 = jnp.float32
    w_ih = params["w_ih"].astype(f32)                # (H, 3H), gates r,z,n
    w_hh = params["w_hh"].astype(f32)
    b_ih = params["b_ih"].astype(f32).reshape(1, 3 * H)
    b_hh = params["b_hh"].astype(f32).reshape(1, 3 * H)

    def gate_w(w, k):                                # (H,H) gate -> (Hp,Hp)
        return _pad2(w[:, k * H:(k + 1) * H], Hp, Hp)

    def gate_b(bv, k):                               # (1,H) gate -> (1,Hp)
        return _pad2(bv[:, k * H:(k + 1) * H], 1, Hp)

    zblk = jnp.zeros((Hp, Hp), f32)
    # rows 0:Hp act on x, rows Hp:2Hp act on h; cols = [r, z, n_in, n_hid]
    wg_x = jnp.concatenate(
        [gate_w(w_ih, 0), gate_w(w_ih, 1), gate_w(w_ih, 2), zblk], axis=1)
    wg_h = jnp.concatenate(
        [gate_w(w_hh, 0), gate_w(w_hh, 1), zblk, gate_w(w_hh, 2)], axis=1)
    wg = jnp.concatenate([wg_x, wg_h], axis=0)       # (2*Hp, 4*Hp)

    bg = jnp.concatenate(
        [gate_b(b_ih, 0) + gate_b(b_hh, 0),
         gate_b(b_ih, 1) + gate_b(b_hh, 1),
         gate_b(b_ih, 2),
         gate_b(b_hh, 2)], axis=1)                   # (1, 4*Hp)

    return {
        "dims": (E, H, C, A, Ep, Hp, Cp, Ap),
        "compute_dtype": compute_dtype,
        "w1": _pad2(params["w1"].astype(f32), Ep, Hp).astype(compute_dtype),
        "b1": _pad2(params["b1"].astype(f32).reshape(1, H), 1, Hp),
        "wg": wg.astype(compute_dtype),
        "bg": bg,
        "ln_g": _pad2(params["ln_g"].astype(f32).reshape(1, H), 1, Hp),
        "ln_b": _pad2(params["ln_b"].astype(f32).reshape(1, H), 1, Hp),
        "wq_h": _pad2(params["wq_h"].astype(f32), Hp, Ap).astype(compute_dtype),
        "wq_z": _pad2(params["wq_z"].astype(f32), Cp, Ap).astype(compute_dtype),
        "bq": _pad2(params["bq"].astype(f32).reshape(1, A), 1, Ap),
    }


# ----------------------------------------------------------------------------
# Wrapper: row-tiled, pipelined pallas_call.
# block_rows: ~512 is a good default; on v7x (64 MiB VMEM / 2 TCs) keep <= 512,
# on v5e/v6e up to 1024 also works.
# ----------------------------------------------------------------------------
def crnn_agent_forward(inputs, hidden_state, z_team, prep,
                       use_layer_norm=False, block_rows=512):
    E, H, C, A, Ep, Hp, Cp, Ap = prep["dims"]
    cdt = prep["compute_dtype"]

    b, a, e = inputs.shape
    assert e == E
    N = b * a
    tm = min(_round_up(block_rows, SUBLANE), _round_up(N, SUBLANE))
    Np = _round_up(N, tm)
    nb = Np // tm

    x2 = _pad2(inputs.reshape(N, e).astype(cdt), Np, Ep)
    h2 = _pad2(hidden_state.reshape(N, H).astype(cdt), Np, Hp)

    # z_team handling (torch: z_team.repeat(2,1,1) when b == 2 * z_team.shape[0])
    bz = z_team.shape[0]
    nz = bz * a
    z_flat = z_team.reshape(nz, C)
    doubled = (b == 2 * bz)
    if doubled and nz % tm == 0:
        # Repeat handled purely by DMA addressing: block t re-reads block t % nzb.
        nzb = nz // tm
        z2 = _pad2(z_flat.astype(cdt), nz, Cp)
        z_index = lambda t: (t % nzb, 0)
    else:
        if doubled:
            # TODO(synk): fallback materializes the repeat; only hit when the
            # row tile does not divide z_team's row count.
            z_flat = jnp.concatenate([z_flat, z_flat], axis=0)
        z2 = _pad2(z_flat.astype(cdt), Np, Cp)
        z_index = lambda t: (t, 0)

    row = lambda t: (t, 0)
    const = lambda t: (0, 0)

    kernel = functools.partial(_crnn_kernel, use_layer_norm, 1.0 / H)

    q_pad, hh_pad = pl.pallas_call(
        kernel,
        out_shape=(jax.ShapeDtypeStruct((Np, Ap), jnp.float32),
                   jax.ShapeDtypeStruct((Np, Hp), jnp.float32)),
        grid=(nb,),
        in_specs=[
            pl.BlockSpec((tm, Ep), row),          # x rows
            pl.BlockSpec((tm, Hp), row),          # h rows
            pl.BlockSpec((tm, Cp), z_index),      # z rows (possibly wrapped)
            pl.BlockSpec((Ep, Hp), const),        # w1      (resident)
            pl.BlockSpec((1, Hp), const),         # b1
            pl.BlockSpec((2 * Hp, 4 * Hp), const),  # packed GRU weight
            pl.BlockSpec((1, 4 * Hp), const),     # packed GRU bias
            pl.BlockSpec((1, Hp), const),         # ln gamma
            pl.BlockSpec((1, Hp), const),         # ln beta
            pl.BlockSpec((Hp, Ap), const),        # q_head (hh part)
            pl.BlockSpec((Cp, Ap), const),        # q_head (z part)
            pl.BlockSpec((1, Ap), const),         # q_head bias
        ],
        out_specs=(pl.BlockSpec((tm, Ap), row),
                   pl.BlockSpec((tm, Hp), row)),
        scratch_shapes=[pltpu.VMEM((tm, 2 * Hp), cdt)],  # cat([x, h]) staging
        compiler_params=pltpu.CompilerParams(
            dimension_semantics=("parallel",),           # 2x on v7x megacore
            vmem_limit_bytes=32 * 1024 * 1024),
    )(x2, h2, z2,
      prep["w1"], prep["b1"], prep["wg"], prep["bg"],
      prep["ln_g"], prep["ln_b"],
      prep["wq_h"], prep["wq_z"], prep["bq"])

    q = q_pad[:N, :A].reshape(b, a, A)
    hh = hh_pad[:N, :H].reshape(b, a, H)
    return q, hh


# ----------------------------------------------------------------------------
# Pure-JAX reference (correctness check only), on the raw params.
# ----------------------------------------------------------------------------
def crnn_agent_reference(inputs, hidden_state, z_team, params,
                         use_layer_norm=False):
    b, a, e = inputs.shape
    N = b * a
    H = params["w1"].shape[1]
    x = inputs.reshape(N, e)
    h = hidden_state.reshape(N, H)

    x = jax.nn.relu(x @ params["w1"] + params["b1"])
    gi = x @ params["w_ih"] + params["b_ih"]
    gh = h @ params["w_hh"] + params["b_hh"]
    r = jax.nn.sigmoid(gi[:, :H] + gh[:, :H])
    z = jax.nn.sigmoid(gi[:, H:2 * H] + gh[:, H:2 * H])
    n = jnp.tanh(gi[:, 2 * H:] + r * gh[:, 2 * H:])
    hh = (1.0 - z) * n + z * h

    if b == z_team.shape[0] * 2:
        z_ = jnp.concatenate([z_team, z_team], axis=0)
    else:
        z_ = z_team
    zc = z_.reshape(N, -1)

    hq = hh
    if use_layer_norm:
        mu = jnp.mean(hq, axis=-1, keepdims=True)
        var = jnp.mean((hq - mu) ** 2, axis=-1, keepdims=True)
        hq = (hq - mu) / jnp.sqrt(var + 1e-5) * params["ln_g"] + params["ln_b"]

    q = hq @ params["wq_h"] + zc @ params["wq_z"] + params["bq"]
    return q.reshape(b, a, -1), hh.reshape(b, a, -1)


# ----------------------------------------------------------------------------
# Deterministic synthetic parameters (shapes from CRNNAgent.__init__).
# ----------------------------------------------------------------------------
def make_params(key, input_shape, rnn_hidden_dim, coach_hidden_dim, n_actions):
    ks = jax.random.split(key, 10)
    H, E, C, A = rnn_hidden_dim, input_shape, coach_hidden_dim, n_actions

    def u(k, shape, fan_in):
        bound = 1.0 / jnp.sqrt(fan_in)
        return jax.random.uniform(k, shape, jnp.float32, -bound, bound)

    return {
        "w1": u(ks[0], (E, H), E),           # fc1: Linear(E, H), stored (in, out)
        "b1": u(ks[1], (1, H), E),
        "w_ih": u(ks[2], (H, 3 * H), H),     # GRUCell weight_ih^T, gates r,z,n
        "b_ih": u(ks[3], (1, 3 * H), H),
        "w_hh": u(ks[4], (H, 3 * H), H),     # GRUCell weight_hh^T
        "b_hh": u(ks[5], (1, 3 * H), H),
        "ln_g": jnp.ones((1, H), jnp.float32),
        "ln_b": jnp.zeros((1, H), jnp.float32),
        "wq_h": u(ks[6], (H, A), H + C),     # q_head split: hh part
        "wq_z": u(ks[7], (C, A), H + C),     # q_head split: z part
        "bq": u(ks[8], (1, A), H + C),
    }


if __name__ == "__main__":
    b, a = 2, 4                 # batch, n_agents
    e, H, C, A = 16, 32, 16, 8  # obs dim, rnn_hidden_dim, coach_hidden_dim, n_actions

    key = jax.random.PRNGKey(0)
    k_in, k_h, k_z, k_p, k_in2, k_h2, k_z2 = jax.random.split(key, 7)

    inputs = jax.random.normal(k_in, (b, a, e), jnp.float32)
    hidden = jax.random.normal(k_h, (b, a, H), jnp.float32)
    z_team = jax.random.normal(k_z, (b, a, C), jnp.float32)
    params = make_params(k_p, e, H, C, A)

    # 1) f32, no LayerNorm
    prep32 = prepare_params(params, jnp.float32)
    q, hh = crnn_agent_forward(inputs, hidden, z_team, prep32,
                               use_layer_norm=False)
    jax.block_until_ready((q, hh))
    q_r, hh_r = crnn_agent_reference(inputs, hidden, z_team, params,
                                     use_layer_norm=False)
    assert q.shape == (b, a, A) and hh.shape == (b, a, H)
    assert jnp.allclose(q, q_r, atol=1e-3, rtol=1e-3)
    assert jnp.allclose(hh, hh_r, atol=1e-3, rtol=1e-3)

    # 2) f32, LayerNorm on the q path
    q, hh = crnn_agent_forward(inputs, hidden, z_team, prep32,
                               use_layer_norm=True)
    q_r, hh_r = crnn_agent_reference(inputs, hidden, z_team, params,
                                     use_layer_norm=True)
    assert jnp.allclose(q, q_r, atol=1e-3, rtol=1e-3)
    assert jnp.allclose(hh, hh_r, atol=1e-3, rtol=1e-3)

    # 3) bf16 activations/weights (f32 accumulation) — loose tolerance
    prep16 = prepare_params(params, jnp.bfloat16)
    q, hh = crnn_agent_forward(inputs, hidden, z_team, prep16,
                               use_layer_norm=False)
    q_r, hh_r = crnn_agent_reference(inputs, hidden, z_team, params,
                                     use_layer_norm=False)
    assert jnp.allclose(q, q_r, atol=1e-1, rtol=1e-1)
    assert jnp.allclose(hh, hh_r, atol=1e-1, rtol=1e-1)

    # 4) doubled batch (b == 2 * z_team.shape[0]) + multi-block row grid:
    #    exercises the wrap-around z index_map and >1 grid block.
    b2 = 4
    inputs2 = jax.random.normal(k_in2, (b2, a, e), jnp.float32)
    hidden2 = jax.random.normal(k_h2, (b2, a, H), jnp.float32)
    z_team2 = jax.random.normal(k_z2, (b2 // 2, a, C), jnp.float32)
    q, hh = crnn_agent_forward(inputs2, hidden2, z_team2, prep32,
                               use_layer_norm=False, block_rows=8)
    q_r, hh_r = crnn_agent_reference(inputs2, hidden2, z_team2, params,
                                     use_layer_norm=False)
    assert jnp.allclose(q, q_r, atol=1e-3, rtol=1e-3)
    assert jnp.allclose(hh, hh_r, atol=1e-3, rtol=1e-3)

    print("KERNEL_OK")
</pallas_src>

<mosaic_0001>
module attributes {stable_mosaic.version = 11 : i64} {
  func.func @_crnn_kernel(%arg0: i32, %arg1: memref<8x128xf32, #tpu.memory_space<vmem>>, %arg2: memref<8x128xf32, #tpu.memory_space<vmem>>, %arg3: memref<8x128xf32, #tpu.memory_space<vmem>>, %arg4: memref<128x128xf32, #tpu.memory_space<vmem>>, %arg5: memref<1x128xf32, #tpu.memory_space<vmem>>, %arg6: memref<256x512xf32, #tpu.memory_space<vmem>>, %arg7: memref<1x512xf32, #tpu.memory_space<vmem>>, %arg8: memref<1x128xf32, #tpu.memory_space<vmem>>, %arg9: memref<1x128xf32, #tpu.memory_space<vmem>>, %arg10: memref<128x128xf32, #tpu.memory_space<vmem>>, %arg11: memref<128x128xf32, #tpu.memory_space<vmem>>, %arg12: memref<1x128xf32, #tpu.memory_space<vmem>>, %arg13: memref<8x128xf32, #tpu.memory_space<vmem>>, %arg14: memref<8x128xf32, #tpu.memory_space<vmem>>, %arg15: memref<8x256xf32, #tpu.memory_space<vmem>>) attributes {dimension_semantics = [#tpu.dimension_semantics<parallel>], iteration_bounds = array<i64: 1>, scalar_prefetch = 0 : i64, scratch_operands = 1 : i64, tpu.core_type = #tpu.core_type<tc>, window_params = [{transform_indices = @transform_0, window_bounds = array<i64: 8, 128>}, {transform_indices = @transform_1, window_bounds = array<i64: 8, 128>}, {transform_indices = @transform_2, window_bounds = array<i64: 8, 128>}, {pipeline_mode = #tpu.pipeline_mode<synchronous>, transform_indices = @transform_3, window_bounds = array<i64: 128, 128>}, {pipeline_mode = #tpu.pipeline_mode<synchronous>, transform_indices = @transform_4, window_bounds = array<i64: 1, 128>}, {pipeline_mode = #tpu.pipeline_mode<synchronous>, transform_indices = @transform_5, window_bounds = array<i64: 256, 512>}, {pipeline_mode = #tpu.pipeline_mode<synchronous>, transform_indices = @transform_6, window_bounds = array<i64: 1, 512>}, {pipeline_mode = #tpu.pipeline_mode<synchronous>, transform_indices = @transform_7, window_bounds = array<i64: 1, 128>}, {pipeline_mode = #tpu.pipeline_mode<synchronous>, transform_indices = @transform_8, window_bounds = array<i64: 1, 128>}, {pipeline_mode = #tpu.pipeline_mode<synchronous>, transform_indices = @transform_9, window_bounds = array<i64: 128, 128>}, {pipeline_mode = #tpu.pipeline_mode<synchronous>, transform_indices = @transform_10, window_bounds = array<i64: 128, 128>}, {pipeline_mode = #tpu.pipeline_mode<synchronous>, transform_indices = @transform_11, window_bounds = array<i64: 1, 128>}, {transform_indices = @transform_12, window_bounds = array<i64: 8, 128>}, {transform_indices = @transform_13, window_bounds = array<i64: 8, 128>}]} {
    %c0 = arith.constant 0 : index
    %c0_0 = arith.constant 0 : index
    %0 = vector.load %arg1[%c0, %c0_0] : memref<8x128xf32, #tpu.memory_space<vmem>>, vector<8x128xf32>
    %c0_1 = arith.constant 0 : index
    %c0_2 = arith.constant 0 : index
    %1 = vector.load %arg4[%c0_1, %c0_2] : memref<128x128xf32, #tpu.memory_space<vmem>>, vector<128x128xf32>
    %cst = arith.constant dense<0.000000e+00> : vector<8x128xf32>
    %2 = tpu.matmul %0, %1, %cst {dimension_numbers = #tpu.dot_dimension_numbers<[1], [0], [0], [1], [0, 0, 1, 1], [], []>} : vector<8x128xf32>, vector<128x128xf32>, vector<8x128xf32> -> vector<8x128xf32>
    %c0_3 = arith.constant 0 : index
    %c0_4 = arith.constant 0 : index
    %3 = vector.load %arg5[%c0_3, %c0_4] : memref<1x128xf32, #tpu.memory_space<vmem>>, vector<1x128xf32>
    %4 = vector.broadcast %3 : vector<1x128xf32> to vector<8x128xf32>
    %5 = arith.addf %2, %4 : vector<8x128xf32>
    %cst_5 = arith.constant 0.000000e+00 : f32
    %6 = vector.broadcast %cst_5 : f32 to vector<8x128xf32>
    %7 = arith.maximumf %5, %6 : vector<8x128xf32>
    %c0_6 = arith.constant 0 : index
    %c0_7 = arith.constant 0 : index
    %8 = vector.load %arg15[%c0_6, %c0_7] : memref<8x256xf32, #tpu.memory_space<vmem>>, vector<8x128xf32>
    tpu.vector_store %arg15[%c0_6, %c0_7], %7 {strides = array<i32>} : memref<8x256xf32, #tpu.memory_space<vmem>>, vector<8x128xf32>,
    %c0_8 = arith.constant 0 : index
    %c0_9 = arith.constant 0 : index
    %9 = vector.load %arg2[%c0_8, %c0_9] : memref<8x128xf32, #tpu.memory_space<vmem>>, vector<8x128xf32>
    %c0_10 = arith.constant 0 : index
    %c128 = arith.constant 128 : index
    %10 = vector.load %arg15[%c0_10, %c128] : memref<8x256xf32, #tpu.memory_space<vmem>>, vector<8x128xf32>
    tpu.vector_store %arg15[%c0_10, %c128], %9 {strides = array<i32>} : memref<8x256xf32, #tpu.memory_space<vmem>>, vector<8x128xf32>,
    %c0_11 = arith.constant 0 : index
    %c0_12 = arith.constant 0 : index
    %11 = vector.load %arg15[%c0_11, %c0_12] : memref<8x256xf32, #tpu.memory_space<vmem>>, vector<8x256xf32>
    %c0_13 = arith.constant 0 : index
    %c0_14 = arith.constant 0 : index
    %12 = vector.load %arg6[%c0_13, %c0_14] : memref<256x512xf32, #tpu.memory_space<vmem>>, vector<256x512xf32>
    %cst_15 = arith.constant dense<0.000000e+00> : vector<8x512xf32>
    %13 = tpu.matmul %11, %12, %cst_15 {dimension_numbers = #tpu.dot_dimension_numbers<[1], [0], [0], [1], [0, 0, 1, 1], [], []>} : vector<8x256xf32>, vector<256x512xf32>, vector<8x512xf32> -> vector<8x512xf32>
    %c0_16 = arith.constant 0 : index
    %c0_17 = arith.constant 0 : index
    %14 = vector.load %arg7[%c0_16, %c0_17] : memref<1x512xf32, #tpu.memory_space<vmem>>, vector<1x512xf32>
    %15 = vector.broadcast %14 : vector<1x512xf32> to vector<8x512xf32>
    %16 = arith.addf %13, %15 : vector<8x512xf32>
    %17 = vector.extract_strided_slice %16 {offsets = [0, 0], sizes = [8, 128], strides = [1, 1]} : vector<8x512xf32> to vector<8x128xf32>
    %18 = arith.negf %17 : vector<8x128xf32>
    %19 = math.exp %18 : vector<8x128xf32>
    %cst_18 = arith.constant 1.000000e+00 : f32
    %20 = vector.broadcast %cst_18 : f32 to vector<8x128xf32>
    %21 = arith.addf %20, %19 : vector<8x128xf32>
    %22 = arith.divf %20, %21 : vector<8x128xf32>
    %23 = vector.extract_strided_slice %16 {offsets = [0, 128], sizes = [8, 128], strides = [1, 1]} : vector<8x512xf32> to vector<8x128xf32>
    %24 = arith.negf %23 : vector<8x128xf32>
    %25 = math.exp %24 : vector<8x128xf32>
    %cst_19 = arith.constant 1.000000e+00 : f32
    %26 = vector.broadcast %cst_19 : f32 to vector<8x128xf32>
    %27 = arith.addf %26, %25 : vector<8x128xf32>
    %28 = arith.divf %26, %27 : vector<8x128xf32>
    %29 = vector.extract_strided_slice %16 {offsets = [0, 256], sizes = [8, 128], strides = [1, 1]} : vector<8x512xf32> to vector<8x128xf32>
    %30 = vector.extract_strided_slice %16 {offsets = [0, 384], sizes = [8, 128], strides = [1, 1]} : vector<8x512xf32> to vector<8x128xf32>
    %31 = arith.mulf %22, %30 : vector<8x128xf32>
    %32 = arith.addf %29, %31 : vector<8x128xf32>
    %33 = math.tanh %32 : vector<8x128xf32>
    %c0_20 = arith.constant 0 : index
    %c0_21 = arith.constant 0 : index
    %34 = vector.load %arg2[%c0_20, %c0_21] : memref<8x128xf32, #tpu.memory_space<vmem>>, vector<8x128xf32>
    %cst_22 = arith.constant 1.000000e+00 : f32
    %35 = vector.broadcast %cst_22 : f32 to vector<8x128xf32>
    %36 = arith.subf %35, %28 : vector<8x128xf32>
    %37 = arith.mulf %36, %33 : vector<8x128xf32>
    %38 = arith.mulf %28, %34 : vector<8x128xf32>
    %39 = arith.addf %37, %38 : vector<8x128xf32>
    %c0_23 = arith.constant 0 : index
    %c0_24 = arith.constant 0 : index
    %40 = vector.load %arg14[%c0_23, %c0_24] : memref<8x128xf32, #tpu.memory_space<vmem>>, vector<8x128xf32>
    tpu.vector_store %arg14[%c0_23, %c0_24], %39 {strides = array<i32>} : memref<8x128xf32, #tpu.memory_space<vmem>>, vector<8x128xf32>,
    %c0_25 = arith.constant 0 : index
    %c0_26 = arith.constant 0 : index
    %41 = vector.load %arg10[%c0_25, %c0_26] : memref<128x128xf32, #tpu.memory_space<vmem>>, vector<128x128xf32>
    %cst_27 = arith.constant dense<0.000000e+00> : vector<8x128xf32>
    %42 = tpu.matmul %39, %41, %cst_27 {dimension_numbers = #tpu.dot_dimension_numbers<[1], [0], [0], [1], [0, 0, 1, 1], [], []>} : vector<8x128xf32>, vector<128x128xf32>, vector<8x128xf32> -> vector<8x128xf32>
    %c0_28 = arith.constant 0 : index
    %c0_29 = arith.constant 0 : index
    %43 = vector.load %arg3[%c0_28, %c0_29] : memref<8x128xf32, #tpu.memory_space<vmem>>, vector<8x128xf32>
    %c0_30 = arith.constant 0 : index
    %c0_31 = arith.constant 0 : index
    %44 = vector.load %arg11[%c0_30, %c0_31] : memref<128x128xf32, #tpu.memory_space<vmem>>, vector<128x128xf32>
    %cst_32 = arith.constant dense<0.000000e+00> : vector<8x128xf32>
    %45 = tpu.matmul %43, %44, %cst_32 {dimension_numbers = #tpu.dot_dimension_numbers<[1], [0], [0], [1], [0, 0, 1, 1], [], []>} : vector<8x128xf32>, vector<128x128xf32>, vector<8x128xf32> -> vector<8x128xf32>
    %46 = arith.addf %42, %45 : vector<8x128xf32>
    %c0_33 = arith.constant 0 : index
    %c0_34 = arith.constant 0 : index
    %47 = vector.load %arg12[%c0_33, %c0_34] : memref<1x128xf32, #tpu.memory_space<vmem>>, vector<1x128xf32>
    %48 = vector.broadcast %47 : vector<1x128xf32> to vector<8x128xf32>
    %49 = arith.addf %46, %48 : vector<8x128xf32>
    %c0_35 = arith.constant 0 : index
    %c0_36 = arith.constant 0 : index
    %50 = vector.load %arg13[%c0_35, %c0_36] : memref<8x128xf32, #tpu.memory_space<vmem>>, vector<8x128xf32>
    tpu.vector_store %arg13[%c0_35, %c0_36], %49 {strides = array<i32>} : memref<8x128xf32, #tpu.memory_space<vmem>>, vector<8x128xf32>,
    return
  }
  func.func @transform_0(%arg0: i32) -> (i32, i32) {
    %c0_i32 = arith.constant 0 : i32
    %c0_i32_0 = arith.constant 0 : i32
    return %arg0, %c0_i32 : i32, i32
  }
  func.func @transform_1(%arg0: i32) -> (i32, i32) {
    %c0_i32 = arith.constant 0 : i32
    %c0_i32_0 = arith.constant 0 : i32
    return %arg0, %c0_i32 : i32, i32
  }
  func.func @transform_2(%arg0: i32) -> (i32, i32) {
    %c0_i32 = arith.constant 0 : i32
    %c0_i32_0 = arith.constant 0 : i32
    return %arg0, %c0_i32 : i32, i32
  }
  func.func @transform_3(%arg0: i32) -> (i32, i32) {
    %c0_i32 = arith.constant 0 : i32
    %c0_i32_0 = arith.constant 0 : i32
    %c0_i32_1 = arith.constant 0 : i32
    return %c0_i32, %c0_i32_0 : i32, i32
  }
  func.func @transform_4(%arg0: i32) -> (i32, i32) {
    %c0_i32 = arith.constant 0 : i32
    %c0_i32_0 = arith.constant 0 : i32
    %c0_i32_1 = arith.constant 0 : i32
    return %c0_i32, %c0_i32_0 : i32, i32
  }
  func.func @transform_5(%arg0: i32) -> (i32, i32) {
    %c0_i32 = arith.constant 0 : i32
    %c0_i32_0 = arith.constant 0 : i32
    %c0_i32_1 = arith.constant 0 : i32
    return %c0_i32, %c0_i32_0 : i32, i32
  }
  func.func @transform_6(%arg0: i32) -> (i32, i32) {
    %c0_i32 = arith.constant 0 : i32
    %c0_i32_0 = arith.constant 0 : i32
    %c0_i32_1 = arith.constant 0 : i32
    return %c0_i32, %c0_i32_0 : i32, i32
  }
  func.func @transform_7(%arg0: i32) -> (i32, i32) {
    %c0_i32 = arith.constant 0 : i32
    %c0_i32_0 = arith.constant 0 : i32
    %c0_i32_1 = arith.constant 0 : i32
    return %c0_i32, %c0_i32_0 : i32, i32
  }
  func.func @transform_8(%arg0: i32) -> (i32, i32) {
    %c0_i32 = arith.constant 0 : i32
    %c0_i32_0 = arith.constant 0 : i32
    %c0_i32_1 = arith.constant 0 : i32
    return %c0_i32, %c0_i32_0 : i32, i32
  }
  func.func @transform_9(%arg0: i32) -> (i32, i32) {
    %c0_i32 = arith.constant 0 : i32
    %c0_i32_0 = arith.constant 0 : i32
    %c0_i32_1 = arith.constant 0 : i32
    return %c0_i32, %c0_i32_0 : i32, i32
  }
  func.func @transform_10(%arg0: i32) -> (i32, i32) {
    %c0_i32 = arith.constant 0 : i32
    %c0_i32_0 = arith.constant 0 : i32
    %c0_i32_1 = arith.constant 0 : i32
    return %c0_i32, %c0_i32_0 : i32, i32
  }
  func.func @transform_11(%arg0: i32) -> (i32, i32) {
    %c0_i32 = arith.constant 0 : i32
    %c0_i32_0 = arith.constant 0 : i32
    %c0_i32_1 = arith.constant 0 : i32
    return %c0_i32, %c0_i32_0 : i32, i32
  }
  func.func @transform_12(%arg0: i32) -> (i32, i32) {
    %c0_i32 = arith.constant 0 : i32
    %c0_i32_0 = arith.constant 0 : i32
    return %arg0, %c0_i32 : i32, i32
  }
  func.func @transform_13(%arg0: i32) -> (i32, i32) {
    %c0_i32 = arith.constant 0 : i32
    %c0_i32_0 = arith.constant 0 : i32
    return %arg0, %c0_i32 : i32, i32
  }
}

</mosaic_0001>

<llo_original>
// kernel: tpu_custom_call.1
$region0: #{tpu_custom_call.1}
  #allocation0 [shape = 'u32[]', space=smem, size = 0x4, offset = 0x4, fixed_abs, tag = 'smem constant byte address 0x4 - core index']
  #allocation1 [shape = 'u32[144,128]{1,0:T(1,128)}', space=vmem, size = 0x12000, scoped, tag = 'internal scratch']
  #allocation2 [shape = 'f32[8,256]{1,0:T(8,128)}', space=vmem, size = 0x2000, scoped, tag = 'scratch operand']
  %s0 = inlined_call_operand.hbm [shape: f32[8,128], index: 0, kind: input, shape index: {}]
  %s1 = inlined_call_operand.hbm [shape: f32[8,128], index: 1, kind: input, shape index: {}]
  %s2 = inlined_call_operand.hbm [shape: f32[8,128], index: 2, kind: input, shape index: {}]
  %s3 = inlined_call_operand.hbm [shape: f32[128,128], index: 3, kind: input, shape index: {}]
  %s4 = inlined_call_operand.vmem [shape: f32[1,128], index: 4, kind: input, shape index: {}]
  %s5 = inlined_call_operand.hbm [shape: f32[256,512], index: 5, kind: input, shape index: {}]
  %s6 = inlined_call_operand.vmem [shape: f32[1,512], index: 6, kind: input, shape index: {}]
  %s7 = inlined_call_operand.vmem [shape: f32[1,128], index: 7, kind: input, shape index: {}]
  %s8 = inlined_call_operand.vmem [shape: f32[1,128], index: 8, kind: input, shape index: {}]
  %s9 = inlined_call_operand.hbm [shape: f32[128,128], index: 9, kind: input, shape index: {}]
  %s10 = inlined_call_operand.hbm [shape: f32[128,128], index: 10, kind: input, shape index: {}]
  %s11 = inlined_call_operand.vmem [shape: f32[1,128], index: 11, kind: input, shape index: {}]
  %s12 = inlined_call_operand.hbm [shape: f32[8,128], index: 12, kind: output, shape index: {0}]
  %s13 = inlined_call_operand.hbm [shape: f32[8,128], index: 13, kind: output, shape index: {1}]
  %14 = xla_tuple %s12, %s13
  %s15 = sld [smem:[#allocation0]]
  $region94: #{tpu_custom_call.1} parent=0
    _
  %s17 = ssub.s32 1, %s15
  %s18 = scalar_select 0, %s17, %s15
  $region1: #{tpu_custom_call.1} parent=0
    #allocation3 [shape = 'u8[4096]{0}', space=vmem, size = 0x1000, scoped, tag = 'input window, operand 0, single buffered']
    #allocation4 [shape = 's32[1]{0}', space=sflag, size = 0x4, scoped, tag = 'scoped memory for tpu_custom_call.1']
    #allocation5 [shape = 's32[1]{0}', space=sflag, size = 0x4, scoped, tag = 'scoped memory for tpu_custom_call.1']
    #allocation6 [shape = 'u8[4096]{0}', space=vmem, size = 0x1000, scoped, tag = 'input window, operand 1, single buffered']
    #allocation7 [shape = 's32[1]{0}', space=sflag, size = 0x4, scoped, tag = 'scoped memory for tpu_custom_call.1']
    #allocation8 [shape = 'u8[4096]{0}', space=vmem, size = 0x1000, scoped, tag = 'input window, operand 2, single buffered']
    #allocation9 [shape = 'u8[65536]{0}', space=vmem, size = 0x10000, scoped, tag = 'input window, operand 3, single buffered']
    #allocation10 [shape = 's32[1]{0}', space=sflag, size = 0x4, scoped, tag = 'scoped memory for tpu_custom_call.1']
    #allocation11 [shape = 'u8[524288]{0}', space=vmem, size = 0x80000, scoped, tag = 'input window, operand 5, single buffered']
    #allocation12 [shape = 'u8[65536]{0}', space=vmem, size = 0x10000, scoped, tag = 'input window, operand 9, single buffered']
    #allocation13 [shape = 's32[1]{0}', space=sflag, size = 0x4, scoped, tag = 'scoped memory for tpu_custom_call.1']
    #allocation14 [shape = 'u8[65536]{0}', space=vmem, size = 0x10000, scoped, tag = 'input window, operand 10, single buffered']
    #allocation15 [shape = 'u8[4096]{0}', space=vmem, size = 0x1000, scoped, tag = 'output window, operand 0, single buffered']
    #allocation16 [shape = 'u8[4096]{0}', space=vmem, size = 0x1000, scoped, tag = 'output window, operand 1, single buffered']
    #allocation17 [shape = 's32[1]{0}', space=sflag, size = 0x4, scoped, tag = 'scoped memory for tpu_custom_call.1']
    %19 = vsyncpa [#allocation4], 0
    %20 = vsyncpa [#allocation7], 0
    %21 = vsyncpa [#allocation10], 0
    %22 = vsyncpa [#allocation13], 0
    %23 = vsyncpa [#allocation5], 0
    %24 = vsyncpa [#allocation17], 0
    // Predicated region
    $region2: #{tpu_custom_call.1} parent=1 // pred_check
      _
    $region3: #{tpu_custom_call.1} parent=1 // pred_check_branch
      %26 = sbr.rel (0) target = $region5
    $region4: #{tpu_custom_call.1} parent=1 // pred_region
      %s28 = ssub.s32 128, 128
      %29 = vsyncadd [#allocation4], %s28
      %s31 = sshll.u32 [#allocation3], 4
      %s32 = int_to_ptr.vmem [resolvable:$true] %s31
      %34 = dma.hbm_to_vmem [thread:$0]  %s0, 128, %s32, [#allocation4]
    $region5: #{tpu_custom_call.1} parent=1 // pred_fallthru
      _
    // Predicated region
    $region6: #{tpu_custom_call.1} parent=1 // pred_check
      _
    $region7: #{tpu_custom_call.1} parent=1 // pred_check_branch
      %36 = sbr.rel (0) target = $region9
    $region8: #{tpu_custom_call.1} parent=1 // pred_region
      %s38 = ssub.s32 128, 128
      %39 = vsyncadd [#allocation7], %s38
      %s41 = sshll.u32 [#allocation6], 4
      %s42 = int_to_ptr.vmem [resolvable:$true] %s41
      %44 = dma.hbm_to_vmem [thread:$0]  %s1, 128, %s42, [#allocation7]
    $region9: #{tpu_custom_call.1} parent=1 // pred_fallthru
      _
    // Predicated region
    $region10: #{tpu_custom_call.1} parent=1 // pred_check
      _
    $region11: #{tpu_custom_call.1} parent=1 // pred_check_branch
      %46 = sbr.rel (0) target = $region13
    $region12: #{tpu_custom_call.1} parent=1 // pred_region
      %s48 = ssub.s32 128, 128
      %49 = vsyncadd [#allocation7], %s48
      %s51 = sshll.u32 [#allocation8], 4
      %s52 = int_to_ptr.vmem [resolvable:$true] %s51
      %54 = dma.hbm_to_vmem [thread:$0]  %s2, 128, %s52, [#allocation7]
    $region13: #{tpu_custom_call.1} parent=1 // pred_fallthru
      _
    // Predicated region
    $region14: #{tpu_custom_call.1} parent=1 // pred_check
      _
    $region15: #{tpu_custom_call.1} parent=1 // pred_check_branch
      %56 = sbr.rel (0) target = $region17
    $region16: #{tpu_custom_call.1} parent=1 // pred_region
      %s58 = ssub.s32 2048, 2048
      %59 = vsyncadd [#allocation10], %s58
      %s60 = sshll.u32 [#allocation9], 4
      %s61 = int_to_ptr.vmem [resolvable:$true] %s60
      %66 = dma.hbm_to_vmem [thread:$0]  %s3, 2048, %s61, [#allocation10], 128, 128, 8
    $region17: #{tpu_custom_call.1} parent=1 // pred_fallthru
      _
    // Predicated region
    $region18: #{tpu_custom_call.1} parent=1 // pred_check
      _
    $region19: #{tpu_custom_call.1} parent=1 // pred_check_branch
      %68 = sbr.rel (0) target = $region21
    $region20: #{tpu_custom_call.1} parent=1 // pred_region
      _
    $region21: #{tpu_custom_call.1} parent=1 // pred_fallthru
      _
    // Predicated region
    $region22: #{tpu_custom_call.1} parent=1 // pred_check
      _
    $region23: #{tpu_custom_call.1} parent=1 // pred_check_branch
      %70 = sbr.rel (0) target = $region25
    $region24: #{tpu_custom_call.1} parent=1 // pred_region
      %s72 = ssub.s32 16384, 16384
      %73 = vsyncadd [#allocation10], %s72
      %s74 = sshll.u32 [#allocation11], 4
      %s75 = int_to_ptr.vmem [resolvable:$true] %s74
      %80 = dma.hbm_to_vmem [thread:$0]  %s5, 16384, %s75, [#allocation10], 512, 512, 32
    $region25: #{tpu_custom_call.1} parent=1 // pred_fallthru
      _
    // Predicated region
    $region26: #{tpu_custom_call.1} parent=1 // pred_check
      _
    $region27: #{tpu_custom_call.1} parent=1 // pred_check_branch
      %82 = sbr.rel (0) target = $region29
    $region28: #{tpu_custom_call.1} parent=1 // pred_region
      _
    $region29: #{tpu_custom_call.1} parent=1 // pred_fallthru
      _
    // Predicated region
    $region30: #{tpu_custom_call.1} parent=1 // pred_check
      _
    $region31: #{tpu_custom_call.1} parent=1 // pred_check_branch
      %84 = sbr.rel (0) target = $region33
    $region32: #{tpu_custom_call.1} parent=1 // pred_region
      _
    $region33: #{tpu_custom_call.1} parent=1 // pred_fallthru
      _
    // Predicated region
    $region34: #{tpu_custom_call.1} parent=1 // pred_check
      _
    $region35: #{tpu_custom_call.1} parent=1 // pred_check_branch
      %86 = sbr.rel (0) target = $region37
    $region36: #{tpu_custom_call.1} parent=1 // pred_region
      _
    $region37: #{tpu_custom_call.1} parent=1 // pred_fallthru
      _
    // Predicated region
    $region38: #{tpu_custom_call.1} parent=1 // pred_check
      _
    $region39: #{tpu_custom_call.1} parent=1 // pred_check_branch
      %88 = sbr.rel (0) target = $region41
    $region40: #{tpu_custom_call.1} parent=1 // pred_region
      %s90 = ssub.s32 2048, 2048
      %91 = vsyncadd [#allocation13], %s90
      %s92 = sshll.u32 [#allocation12], 4
      %s93 = int_to_ptr.vmem [resolvable:$true] %s92
      %98 = dma.hbm_to_vmem [thread:$0]  %s9, 2048, %s93, [#allocation13], 128, 128, 8
    $region41: #{tpu_custom_call.1} parent=1 // pred_fallthru
      _
    // Predicated region
    $region42: #{tpu_custom_call.1} parent=1 // pred_check
      _
    $region43: #{tpu_custom_call.1} parent=1 // pred_check_branch
      %100 = sbr.rel (0) target = $region45
    $region44: #{tpu_custom_call.1} parent=1 // pred_region
      %s102 = ssub.s32 2048, 2048
      %103 = vsyncadd [#allocation13], %s102
      %s104 = sshll.u32 [#allocation14], 4
      %s105 = int_to_ptr.vmem [resolvable:$true] %s104
      %110 = dma.hbm_to_vmem [thread:$0]  %s10, 2048, %s105, [#allocation13], 128, 128, 8
    $region45: #{tpu_custom_call.1} parent=1 // pred_fallthru
      _
    // Predicated region
    $region46: #{tpu_custom_call.1} parent=1 // pred_check
      _
    $region47: #{tpu_custom_call.1} parent=1 // pred_check_branch
      %112 = sbr.rel (0) target = $region49
    $region48: #{tpu_custom_call.1} parent=1 // pred_region
      _
    $region49: #{tpu_custom_call.1} parent=1 // pred_fallthru
      _
    // Predicated region
    $region50: #{tpu_custom_call.1} parent=1 // pred_check
      _
    $region51: #{tpu_custom_call.1} parent=1 // pred_check_branch
      %114 = sbr.rel (0) target = $region53
    $region52: #{tpu_custom_call.1} parent=1 // pred_region
      %115 = dma.done [#allocation4], 128
    $region53: #{tpu_custom_call.1} parent=1 // pred_fallthru
      _
    // Predicated region
    $region54: #{tpu_custom_call.1} parent=1 // pred_check
      _
    $region55: #{tpu_custom_call.1} parent=1 // pred_check_branch
      %117 = sbr.rel (0) target = $region57
    $region56: #{tpu_custom_call.1} parent=1 // pred_region
      %118 = dma.done [#allocation7], 128
    $region57: #{tpu_custom_call.1} parent=1 // pred_fallthru
      _
    // Predicated region
    $region58: #{tpu_custom_call.1} parent=1 // pred_check
      _
    $region59: #{tpu_custom_call.1} parent=1 // pred_check_branch
      %120 = sbr.rel (0) target = $region61
    $region60: #{tpu_custom_call.1} parent=1 // pred_region
      %121 = dma.done [#allocation7], 128
    $region61: #{tpu_custom_call.1} parent=1 // pred_fallthru
      _
    // Predicated region
    $region62: #{tpu_custom_call.1} parent=1 // pred_check
      _
    $region63: #{tpu_custom_call.1} parent=1 // pred_check_branch
      %123 = sbr.rel (0) target = $region65
    $region64: #{tpu_custom_call.1} parent=1 // pred_region
      %124 = dma.done [#allocation10], 2048
    $region65: #{tpu_custom_call.1} parent=1 // pred_fallthru
      _
    // Predicated region
    $region66: #{tpu_custom_call.1} parent=1 // pred_check
      _
    $region67: #{tpu_custom_call.1} parent=1 // pred_check_branch
      %126 = sbr.rel (0) target = $region69
    $region68: #{tpu_custom_call.1} parent=1 // pred_region
      %127 = dma.done [#allocation10], 16384
    $region69: #{tpu_custom_call.1} parent=1 // pred_fallthru
      _
    // Predicated region
    $region70: #{tpu_custom_call.1} parent=1 // pred_check
      _
    $region71: #{tpu_custom_call.1} parent=1 // pred_check_branch
      %129 = sbr.rel (0) target = $region73
    $region72: #{tpu_custom_call.1} parent=1 // pred_region
      %130 = dma.done [#allocation13], 2048
    $region73: #{tpu_custom_call.1} parent=1 // pred_fallthru
      _
    // Predicated region
    $region74: #{tpu_custom_call.1} parent=1 // pred_check
      _
    $region75: #{tpu_custom_call.1} parent=1 // pred_check_branch
      %132 = sbr.rel (0) target = $region77
    $region76: #{tpu_custom_call.1} parent=1 // pred_region
      %133 = dma.done [#allocation13], 2048
    $region77: #{tpu_custom_call.1} parent=1 // pred_fallthru
      _
    %v134 = vld [vmem:[#allocation3] sm:$0xff]
    %v135 = vld [vmem:[#allocation9] sm:$0xff]
    %v136 = vld [vmem:[#allocation9 + $0x8] sm:$0xff]
    %v137 = vld [vmem:[#allocation9 + $0x10] sm:$0xff]
    %v138 = vld [vmem:[#allocation9 + $0x18] sm:$0xff]
    %v139 = vld [vmem:[#allocation9 + $0x20] sm:$0xff]
    %v140 = vld [vmem:[#allocation9 + $0x28] sm:$0xff]
    %v141 = vld [vmem:[#allocation9 + $0x30] sm:$0xff]
    %v142 = vld [vmem:[#allocation9 + $0x38] sm:$0xff]
    %v143 = vld [vmem:[#allocation9 + $0x40] sm:$0xff]
    %v144 = vld [vmem:[#allocation9 + $0x48] sm:$0xff]
    %v145 = vld [vmem:[#allocation9 + $0x50] sm:$0xff]
    %v146 = vld [vmem:[#allocation9 + $0x58] sm:$0xff]
    %v147 = vld [vmem:[#allocation9 + $0x60] sm:$0xff]
    %v148 = vld [vmem:[#allocation9 + $0x68] sm:$0xff]
    %v149 = vld [vmem:[#allocation9 + $0x70] sm:$0xff]
    %v150 = vld [vmem:[#allocation9 + $0x78] sm:$0xff]
    %v151 = vld [vmem:[%s4] sm:$0x1]
    %v153 = vlaneseq
    %v154 = vshrl.u32 %v153, 7
    %v155 = vsub.s32 0, %v154
    %v156 = vrot.slane %v151, %v155
    %158 = vmatprep.subr.mxu0 0.0
    %159 = vmatpush1.msra.mxu0 %v135
    %160 = vmatprep.subr.mxu0 0.0
    %161 = vmatpush1.msra.mxu0 %v136
    %162 = vmatprep.subr.mxu0 0.0
    %163 = vmatpush1.msra.mxu0 %v137
    %164 = vmatprep.subr.mxu0 0.0
    %165 = vmatpush1.msra.mxu0 %v138
    %166 = vmatprep.subr.mxu0 0.0
    %167 = vmatpush1.msra.mxu0 %v139
    %168 = vmatprep.subr.mxu0 0.0
    %169 = vmatpush1.msra.mxu0 %v140
    %170 = vmatprep.subr.mxu0 0.0
    %171 = vmatpush1.msra.mxu0 %v141
    %172 = vmatprep.subr.mxu0 0.0
    %173 = vmatpush1.msra.mxu0 %v142
    %174 = vmatprep.subr.mxu0 0.0
    %175 = vmatpush1.msra.mxu0 %v143
    %176 = vmatprep.subr.mxu0 0.0
    %177 = vmatpush1.msra.mxu0 %v144
    %178 = vmatprep.subr.mxu0 0.0
    %179 = vmatpush1.msra.mxu0 %v145
    %180 = vmatprep.subr.mxu0 0.0
    %181 = vmatpush1.msra.mxu0 %v146
    %182 = vmatprep.subr.mxu0 0.0
    %183 = vmatpush1.msra.mxu0 %v147
    %184 = vmatprep.subr.mxu0 0.0
    %185 = vmatpush1.msra.mxu0 %v148
    %186 = vmatprep.subr.mxu0 0.0
    %187 = vmatpush1.msra.mxu0 %v149
    %188 = vmatprep.subr.mxu0 0.0
    %189 = vmatpush1.msra.mxu0 %v150
    %190 = vmatprep.subr.mxu0 0.0
    %191 = vmatpush1.msra.mxu0 0.0
    %192 = vmatprep.subr.mxu0 0.0
    %193 = vmatpush1.msra.mxu0 0.0
    %194 = vmatprep.subr.mxu0 0.0
    %195 = vmatpush1.msra.mxu0 0.0
    %196 = vmatprep.subr.mxu0 0.0
    %197 = vmatpush1.msra.mxu0 0.0
    %198 = vmatprep.subr.mxu0 0.0
    %199 = vmatpush1.msra.mxu0 0.0
    %200 = vmatprep.subr.mxu0 0.0
    %201 = vmatpush1.msra.mxu0 0.0
    %202 = vmatprep.subr.mxu0 0.0
    %203 = vmatpush1.msra.mxu0 0.0
    %204 = vmatprep.subr.mxu0 0.0
    %205 = vmatpush1.msra.mxu0 0.0
    %206 = vmatprep.subr.mxu0 0.0
    %207 = vmatpush1.msra.mxu0 0.0
    %208 = vmatprep.subr.mxu0 0.0
    %209 = vmatpush1.msra.mxu0 0.0
    %210 = vmatprep.subr.mxu0 0.0
    %211 = vmatpush1.msra.mxu0 0.0
    %212 = vmatprep.subr.mxu0 0.0
    %213 = vmatpush1.msra.mxu0 0.0
    %214 = vmatprep.subr.mxu0 0.0
    %215 = vmatpush1.msra.mxu0 0.0
    %216 = vmatprep.subr.mxu0 0.0
    %217 = vmatpush1.msra.mxu0 0.0
    %218 = vmatprep.subr.mxu0 0.0
    %219 = vmatpush1.msra.mxu0 0.0
    %220 = vmatprep.subr.mxu0 0.0
    %221 = vmatpush1.msra.mxu0 0.0
    %222 = vmatprep.mubr.f32.mxu0 0.0
    %223 = vmatmul.mubr.f32.gmra.mrb[0].mxu0 %v134
    %v224 = vpop.f32.mrb[0].mxu0
    %v225 = vadd.f32 %v156, %v224
    %v226 = vpop.f32.mrb[0].mxu0
    %227 = vdwg.mxu0
    %v228 = vmax.f32 %v225, 0.0
    %229 = vst [vmem:[#allocation2] sm:$0xff] %v228
    %v230 = vld [vmem:[#allocation6] sm:$0xff]
    %231 = vst [vmem:[#allocation2 + $0x8] sm:$0xff] %v230
    %v232 = vld [vmem:[#allocation2] sm:$0xff]
    %v233 = vld [vmem:[#allocation2 + $0x8] sm:$0xff]
    %v234 = vld [vmem:[#allocation11] sm:$0xff]
    %v235 = vld [vmem:[#allocation11 + $0x8] sm:$0xff]
    %v236 = vld [vmem:[#allocation11 + $0x10] sm:$0xff]
    %v237 = vld [vmem:[#allocation11 + $0x18] sm:$0xff]
    %v238 = vld [vmem:[#allocation11 + $0x20] sm:$0xff]
    %v239 = vld [vmem:[#allocation11 + $0x28] sm:$0xff]
    %v240 = vld [vmem:[#allocation11 + $0x30] sm:$0xff]
    %v241 = vld [vmem:[#allocation11 + $0x38] sm:$0xff]
    %v242 = vld [vmem:[#allocation11 + $0x40] sm:$0xff]
    %v243 = vld [vmem:[#allocation11 + $0x48] sm:$0xff]
    %v244 = vld [vmem:[#allocation11 + $0x50] sm:$0xff]
    %v245 = vld [vmem:[#allocation11 + $0x58] sm:$0xff]
    %v246 = vld [vmem:[#allocation11 + $0x60] sm:$0xff]
    %v247 = vld [vmem:[#allocation11 + $0x68] sm:$0xff]
    %v248 = vld [vmem:[#allocation11 + $0x70] sm:$0xff]
    %v249 = vld [vmem:[#allocation11 + $0x78] sm:$0xff]
    %v250 = vld [vmem:[#allocation11 + $0x80] sm:$0xff]
    %v251 = vld [vmem:[#allocation11 + $0x88] sm:$0xff]
    %v252 = vld [vmem:[#allocation11 + $0x90] sm:$0xff]
    %v253 = vld [vmem:[#allocation11 + $0x98] sm:$0xff]
    %v254 = vld [vmem:[#allocation11 + $0xa0] sm:$0xff]
    %v255 = vld [vmem:[#allocation11 + $0xa8] sm:$0xff]
    %v256 = vld [vmem:[#allocation11 + $0xb0] sm:$0xff]
    %v257 = vld [vmem:[#allocation11 + $0xb8] sm:$0xff]
    %v258 = vld [vmem:[#allocation11 + $0xc0] sm:$0xff]
    %v259 = vld [vmem:[#allocation11 + $0xc8] sm:$0xff]
    %v260 = vld [vmem:[#allocation11 + $0xd0] sm:$0xff]
    %v261 = vld [vmem:[#allocation11 + $0xd8] sm:$0xff]
    %v262 = vld [vmem:[#allocation11 + $0xe0] sm:$0xff]
    %v263 = vld [vmem:[#allocation11 + $0xe8] sm:$0xff]
    %v264 = vld [vmem:[#allocation11 + $0xf0] sm:$0xff]
    %v265 = vld [vmem:[#allocation11 + $0xf8] sm:$0xff]
    %v266 = vld [vmem:[#allocation11 + $0x100] sm:$0xff]
    %v267 = vld [vmem:[#allocation11 + $0x108] sm:$0xff]
    %v268 = vld [vmem:[#allocation11 + $0x110] sm:$0xff]
    %v269 = vld [vmem:[#allocation11 + $0x118] sm:$0xff]
    %v270 = vld [vmem:[#allocation11 + $0x120] sm:$0xff]
    %v271 = vld [vmem:[#allocation11 + $0x128] sm:$0xff]
    %v272 = vld [vmem:[#allocation11 + $0x130] sm:$0xff]
    %v273 = vld [vmem:[#allocation11 + $0x138] sm:$0xff]
    %v274 = vld [vmem:[#allocation11 + $0x140] sm:$0xff]
    %v275 = vld [vmem:[#allocation11 + $0x148] sm:$0xff]
    %v276 = vld [vmem:[#allocation11 + $0x150] sm:$0xff]
    %v277 = vld [vmem:[#allocation11 + $0x158] sm:$0xff]
    %v278 = vld [vmem:[#allocation11 + $0x160] sm:$0xff]
    %v279 = vld [vmem:[#allocation11 + $0x168] sm:$0xff]
    %v280 = vld [vmem:[#allocation11 + $0x170] sm:$0xff]
    %v281 = vld [vmem:[#allocation11 + $0x178] sm:$0xff]
    %v282 = vld [vmem:[#allocation11 + $0x180] sm:$0xff]
    %v283 = vld [vmem:[#allocation11 + $0x188] sm:$0xff]
    %v284 = vld [vmem:[#allocation11 + $0x190] sm:$0xff]
    %v285 = vld [vmem:[#allocation11 + $0x198] sm:$0xff]
    %v286 = vld [vmem:[#allocation11 + $0x1a0] sm:$0xff]
    %v287 = vld [vmem:[#allocation11 + $0x1a8] sm:$0xff]
    %v288 = vld [vmem:[#allocation11 + $0x1b0] sm:$0xff]
    %v289 = vld [vmem:[#allocation11 + $0x1b8] sm:$0xff]
    %v290 = vld [vmem:[#allocation11 + $0x1c0] sm:$0xff]
    %v291 = vld [vmem:[#allocation11 + $0x1c8] sm:$0xff]
    %v292 = vld [vmem:[#allocation11 + $0x1d0] sm:$0xff]
    %v293 = vld [vmem:[#allocation11 + $0x1d8] sm:$0xff]
    %v294 = vld [vmem:[#allocation11 + $0x1e0] sm:$0xff]
    %v295 = vld [vmem:[#allocation11 + $0x1e8] sm:$0xff]
    %v296 = vld [vmem:[#allocation11 + $0x1f0] sm:$0xff]
    %v297 = vld [vmem:[#allocation11 + $0x1f8] sm:$0xff]
    %v298 = vld [vmem:[#allocation11 + $0x200] sm:$0xff]
    %v299 = vld [vmem:[#allocation11 + $0x208] sm:$0xff]
    %v300 = vld [vmem:[#allocation11 + $0x210] sm:$0xff]
    %v301 = vld [vmem:[#allocation11 + $0x218] sm:$0xff]
    %v302 = vld [vmem:[#allocation11 + $0x220] sm:$0xff]
    %v303 = vld [vmem:[#allocation11 + $0x228] sm:$0xff]
    %v304 = vld [vmem:[#allocation11 + $0x230] sm:$0xff]
    %v305 = vld [vmem:[#allocation11 + $0x238] sm:$0xff]
    %v306 = vld [vmem:[#allocation11 + $0x240] sm:$0xff]
    %v307 = vld [vmem:[#allocation11 + $0x248] sm:$0xff]
    %v308 = vld [vmem:[#allocation11 + $0x250] sm:$0xff]
    %v309 = vld [vmem:[#allocation11 + $0x258] sm:$0xff]
    %v310 = vld [vmem:[#allocation11 + $0x260] sm:$0xff]
    %v311 = vld [vmem:[#allocation11 + $0x268] sm:$0xff]
    %v312 = vld [vmem:[#allocation11 + $0x270] sm:$0xff]
    %v313 = vld [vmem:[#allocation11 + $0x278] sm:$0xff]
    %v314 = vld [vmem:[#allocation11 + $0x280] sm:$0xff]
    %v315 = vld [vmem:[#allocation11 + $0x288] sm:$0xff]
    %v316 = vld [vmem:[#allocation11 + $0x290] sm:$0xff]
    %v317 = vld [vmem:[#allocation11 + $0x298] sm:$0xff]
    %v318 = vld [vmem:[#allocation11 + $0x2a0] sm:$0xff]
    %v319 = vld [vmem:[#allocation11 + $0x2a8] sm:$0xff]
    %v320 = vld [vmem:[#allocation11 + $0x2b0] sm:$0xff]
    %v321 = vld [vmem:[#allocation11 + $0x2b8] sm:$0xff]
    %v322 = vld [vmem:[#allocation11 + $0x2c0] sm:$0xff]
    %v323 = vld [vmem:[#allocation11 + $0x2c8] sm:$0xff]
    %v324 = vld [vmem:[#allocation11 + $0x2d0] sm:$0xff]
    %v325 = vld [vmem:[#allocation11 + $0x2d8] sm:$0xff]
    %v326 = vld [vmem:[#allocation11 + $0x2e0] sm:$0xff]
    %v327 = vld [vmem:[#allocation11 + $0x2e8] sm:$0xff]
    %v328 = vld [vmem:[#allocation11 + $0x2f0] sm:$0xff]
    %v329 = vld [vmem:[#allocation11 + $0x2f8] sm:$0xff]
    %v330 = vld [vmem:[#allocation11 + $0x300] sm:$0xff]
    %v331 = vld [vmem:[#allocation11 + $0x308] sm:$0xff]
    %v332 = vld [vmem:[#allocation11 + $0x310] sm:$0xff]
    %v333 = vld [vmem:[#allocation11 + $0x318] sm:$0xff]
    %v334 = vld [vmem:[#allocation11 + $0x320] sm:$0xff]
    %v335 = vld [vmem:[#allocation11 + $0x328] sm:$0xff]
    %v336 = vld [vmem:[#allocation11 + $0x330] sm:$0xff]
    %v337 = vld [vmem:[#allocation11 + $0x338] sm:$0xff]
    %v338 = vld [vmem:[#allocation11 + $0x340] sm:$0xff]
    %v339 = vld [vmem:[#allocation11 + $0x348] sm:$0xff]
    %v340 = vld [vmem:[#allocation11 + $0x350] sm:$0xff]
    %v341 = vld [vmem:[#allocation11 + $0x358] sm:$0xff]
    %v342 = vld [vmem:[#allocation11 + $0x360] sm:$0xff]
    %v343 = vld [vmem:[#allocation11 + $0x368] sm:$0xff]
    %v344 = vld [vmem:[#allocation11 + $0x370] sm:$0xff]
    %v345 = vld [vmem:[#allocation11 + $0x378] sm:$0xff]
    %v346 = vld [vmem:[#allocation11 + $0x380] sm:$0xff]
    %v347 = vld [vmem:[#allocation11 + $0x388] sm:$0xff]
    %v348 = vld [vmem:[#allocation11 + $0x390] sm:$0xff]
    %v349 = vld [vmem:[#allocation11 + $0x398] sm:$0xff]
    %v350 = vld [vmem:[#allocation11 + $0x3a0] sm:$0xff]
    %v351 = vld [vmem:[#allocation11 + $0x3a8] sm:$0xff]
    %v352 = vld [vmem:[#allocation11 + $0x3b0] sm:$0xff]
    %v353 = vld [vmem:[#allocation11 + $0x3b8] sm:$0xff]
    %v354 = vld [vmem:[#allocation11 + $0x3c0] sm:$0xff]
    %v355 = vld [vmem:[#allocation11 + $0x3c8] sm:$0xff]
    %v356 = vld [vmem:[#allocation11 + $0x3d0] sm:$0xff]
    %v357 = vld [vmem:[#allocation11 + $0x3d8] sm:$0xff]
    %v358 = vld [vmem:[#allocation11 + $0x3e0] sm:$0xff]
    %v359 = vld [vmem:[#allocation11 + $0x3e8] sm:$0xff]
    %v360 = vld [vmem:[#allocation11 + $0x3f0] sm:$0xff]
    %v361 = vld [vmem:[#allocation11 + $0x3f8] sm:$0xff]
    %v362 = vld [vmem:[%s6] sm:$0xf]
    %v364 = vlaneseq
    %v365 = vshrl.u32 %v364, 7
    %v366 = vsub.s32 0, %v365
    %v367 = vrot.slane %v362, %v366
    %v368 = vlaneseq
    %v369 = vshrl.u32 %v368, 7
    %v370 = vsub.s32 1, %v369
    %v371 = vrot.slane %v362, %v370
    %v372 = vlaneseq
    %v373 = vshrl.u32 %v372, 7
    %v374 = vsub.s32 2, %v373
    %v375 = vrot.slane %v362, %v374
    %v376 = vlaneseq
    %v377 = vshrl.u32 %v376, 7
    %v378 = vsub.s32 3, %v377
    %v379 = vrot.slane %v362, %v378
    %384 = vmatprep.subr.mxu0 %v235
    %385 = vmatpush1.msra.mxu0 %v234
    %386 = vmatprep.subr.mxu0 %v239
    %387 = vmatpush1.msra.mxu0 %v238
    %388 = vmatprep.subr.mxu0 %v243
    %389 = vmatpush1.msra.mxu0 %v242
    %390 = vmatprep.subr.mxu0 %v247
    %391 = vmatpush1.msra.mxu0 %v246
    %392 = vmatprep.subr.mxu0 %v251
    %393 = vmatpush1.msra.mxu0 %v250
    %394 = vmatprep.subr.mxu0 %v255
    %395 = vmatpush1.msra.mxu0 %v254
    %396 = vmatprep.subr.mxu0 %v259
    %397 = vmatpush1.msra.mxu0 %v258
    %398 = vmatprep.subr.mxu0 %v263
    %399 = vmatpush1.msra.mxu0 %v262
    %400 = vmatprep.subr.mxu0 %v267
    %401 = vmatpush1.msra.mxu0 %v266
    %402 = vmatprep.subr.mxu0 %v271
    %403 = vmatpush1.msra.mxu0 %v270
    %404 = vmatprep.subr.mxu0 %v275
    %405 = vmatpush1.msra.mxu0 %v274
    %406 = vmatprep.subr.mxu0 %v279
    %407 = vmatpush1.msra.mxu0 %v278
    %408 = vmatprep.subr.mxu0 %v283
    %409 = vmatpush1.msra.mxu0 %v282
    %410 = vmatprep.subr.mxu0 %v287
    %411 = vmatpush1.msra.mxu0 %v286
    %412 = vmatprep.subr.mxu0 %v291
    %413 = vmatpush1.msra.mxu0 %v290
    %414 = vmatprep.subr.mxu0 %v295
    %415 = vmatpush1.msra.mxu0 %v294
    %416 = vmatprep.subr.mxu0 %v299
    %417 = vmatpush1.msra.mxu0 %v298
    %418 = vmatprep.subr.mxu0 %v303
    %419 = vmatpush1.msra.mxu0 %v302
    %420 = vmatprep.subr.mxu0 %v307
    %421 = vmatpush1.msra.mxu0 %v306
    %422 = vmatprep.subr.mxu0 %v311
    %423 = vmatpush1.msra.mxu0 %v310
    %424 = vmatprep.subr.mxu0 %v315
    %425 = vmatpush1.msra.mxu0 %v314
    %426 = vmatprep.subr.mxu0 %v319
    %427 = vmatpush1.msra.mxu0 %v318
    %428 = vmatprep.subr.mxu0 %v323
    %429 = vmatpush1.msra.mxu0 %v322
    %430 = vmatprep.subr.mxu0 %v327
    %431 = vmatpush1.msra.mxu0 %v326
    %432 = vmatprep.subr.mxu0 %v331
    %433 = vmatpush1.msra.mxu0 %v330
    %434 = vmatprep.subr.mxu0 %v335
    %435 = vmatpush1.msra.mxu0 %v334
    %436 = vmatprep.subr.mxu0 %v339
    %437 = vmatpush1.msra.mxu0 %v338
    %438 = vmatprep.subr.mxu0 %v343
    %439 = vmatpush1.msra.mxu0 %v342
    %440 = vmatprep.subr.mxu0 %v347
    %441 = vmatpush1.msra.mxu0 %v346
    %442 = vmatprep.subr.mxu0 %v351
    %443 = vmatpush1.msra.mxu0 %v350
    %444 = vmatprep.subr.mxu0 %v355
    %445 = vmatpush1.msra.mxu0 %v354
    %446 = vmatprep.subr.mxu0 %v359
    %447 = vmatpush1.msra.mxu0 %v358
    %448 = vmatprep.mubr.f32.mxu0 %v233
    %449 = vmatmul.mubr.f32.gmra.mrb[0].mxu0 %v232
    %v450 = vpop.f32.mrb[0].mxu0
    %v451 = vadd.f32 %v367, %v450
    %v452 = vpop.f32.mrb[0].mxu0
    %v453 = vadd.f32 %v371, %v452
    %454 = vdwg.mxu0
    %455 = vmatprep.subr.mxu0 %v237
    %456 = vmatpush1.msra.mxu0 %v236
    %457 = vmatprep.subr.mxu0 %v241
    %458 = vmatpush1.msra.mxu0 %v240
    %459 = vmatprep.subr.mxu0 %v245
    %460 = vmatpush1.msra.mxu0 %v244
    %461 = vmatprep.subr.mxu0 %v249
    %462 = vmatpush1.msra.mxu0 %v248
    %463 = vmatprep.subr.mxu0 %v253
    %464 = vmatpush1.msra.mxu0 %v252
    %465 = vmatprep.subr.mxu0 %v257
    %466 = vmatpush1.msra.mxu0 %v256
    %467 = vmatprep.subr.mxu0 %v261
    %468 = vmatpush1.msra.mxu0 %v260
    %469 = vmatprep.subr.mxu0 %v265
    %470 = vmatpush1.msra.mxu0 %v264
    %471 = vmatprep.subr.mxu0 %v269
    %472 = vmatpush1.msra.mxu0 %v268
    %473 = vmatprep.subr.mxu0 %v273
    %474 = vmatpush1.msra.mxu0 %v272
    %475 = vmatprep.subr.mxu0 %v277
    %476 = vmatpush1.msra.mxu0 %v276
    %477 = vmatprep.subr.mxu0 %v281
    %478 = vmatpush1.msra.mxu0 %v280
    %479 = vmatprep.subr.mxu0 %v285
    %480 = vmatpush1.msra.mxu0 %v284
    %481 = vmatprep.subr.mxu0 %v289
    %482 = vmatpush1.msra.mxu0 %v288
    %483 = vmatprep.subr.mxu0 %v293
    %484 = vmatpush1.msra.mxu0 %v292
    %485 = vmatprep.subr.mxu0 %v297
    %486 = vmatpush1.msra.mxu0 %v296
    %487 = vmatprep.subr.mxu0 %v301
    %488 = vmatpush1.msra.mxu0 %v300
    %489 = vmatprep.subr.mxu0 %v305
    %490 = vmatpush1.msra.mxu0 %v304
    %491 = vmatprep.subr.mxu0 %v309
    %492 = vmatpush1.msra.mxu0 %v308
    %493 = vmatprep.subr.mxu0 %v313
    %494 = vmatpush1.msra.mxu0 %v312
    %495 = vmatprep.subr.mxu0 %v317
    %496 = vmatpush1.msra.mxu0 %v316
    %497 = vmatprep.subr.mxu0 %v321
    %498 = vmatpush1.msra.mxu0 %v320
    %499 = vmatprep.subr.mxu0 %v325
    %500 = vmatpush1.msra.mxu0 %v324
    %501 = vmatprep.subr.mxu0 %v329
    %502 = vmatpush1.msra.mxu0 %v328
    %503 = vmatprep.subr.mxu0 %v333
    %504 = vmatpush1.msra.mxu0 %v332
    %505 = vmatprep.subr.mxu0 %v337
    %506 = vmatpush1.msra.mxu0 %v336
    %507 = vmatprep.subr.mxu0 %v341
    %508 = vmatpush1.msra.mxu0 %v340
    %509 = vmatprep.subr.mxu0 %v345
    %510 = vmatpush1.msra.mxu0 %v344
    %511 = vmatprep.subr.mxu0 %v349
    %512 = vmatpush1.msra.mxu0 %v348
    %513 = vmatprep.subr.mxu0 %v353
    %514 = vmatpush1.msra.mxu0 %v352
    %515 = vmatprep.subr.mxu0 %v357
    %516 = vmatpush1.msra.mxu0 %v356
    %517 = vmatprep.subr.mxu0 %v361
    %518 = vmatpush1.msra.mxu0 %v360
    %519 = vmatprep.mubr.f32.mxu0 %v233
    %520 = vmatmul.mubr.f32.gmra.mrb[0].mxu0 %v232
    %v521 = vpop.f32.mrb[0].mxu0
    %v522 = vadd.f32 %v375, %v521
    %v523 = vpop.f32.mrb[0].mxu0
    %v524 = vadd.f32 %v379, %v523
    %525 = vdwg.mxu0
    %v526 = vxor.u32 %v451, 2147483648
    %v527 = vmul.f32 %v526, 1.442695
    %v528 = vpow.pop %v527
    %v529 = vadd.f32 %v528, 1.0
    %v530 = vrcp.pop %v529
    %v531 = vmul.f32 1.0, %v530
    %v532 = vxor.u32 %v453, 2147483648
    %v533 = vmul.f32 %v532, 1.442695
    %v534 = vpow.pop %v533
    %v535 = vadd.f32 %v534, 1.0
    %v536 = vrcp.pop %v535
    %v537 = vmul.f32 1.0, %v536
    %v538 = vmul.f32 %v531, %v524
    %v539 = vadd.f32 %v522, %v538
    %v540 = vtanh.pop %v539
    %v541 = vld [vmem:[#allocation6] sm:$0xff]
    %v542 = vsub.f32 1.0, %v537
    %v543 = vmul.f32 %v542, %v540
    %v544 = vmul.f32 %v537, %v541
    %v545 = vadd.f32 %v543, %v544
    %546 = vst [vmem:[#allocation16] sm:$0xff] %v545
    %v547 = vld [vmem:[#allocation12] sm:$0xff]
    %v548 = vld [vmem:[#allocation12 + $0x8] sm:$0xff]
    %v549 = vld [vmem:[#allocation12 + $0x10] sm:$0xff]
    %v550 = vld [vmem:[#allocation12 + $0x18] sm:$0xff]
    %v551 = vld [vmem:[#allocation12 + $0x20] sm:$0xff]
    %v552 = vld [vmem:[#allocation12 + $0x28] sm:$0xff]
    %v553 = vld [vmem:[#allocation12 + $0x30] sm:$0xff]
    %v554 = vld [vmem:[#allocation12 + $0x38] sm:$0xff]
    %v555 = vld [vmem:[#allocation12 + $0x40] sm:$0xff]
    %v556 = vld [vmem:[#allocation12 + $0x48] sm:$0xff]
    %v557 = vld [vmem:[#allocation12 + $0x50] sm:$0xff]
    %v558 = vld [vmem:[#allocation12 + $0x58] sm:$0xff]
    %v559 = vld [vmem:[#allocation12 + $0x60] sm:$0xff]
    %v560 = vld [vmem:[#allocation12 + $0x68] sm:$0xff]
    %v561 = vld [vmem:[#allocation12 + $0x70] sm:$0xff]
    %v562 = vld [vmem:[#allocation12 + $0x78] sm:$0xff]
    %v563 = vld [vmem:[#allocation8] sm:$0xff]
    %v564 = vld [vmem:[#allocation14] sm:$0xff]
    %v565 = vld [vmem:[#allocation14 + $0x8] sm:$0xff]
    %v566 = vld [vmem:[#allocation14 + $0x10] sm:$0xff]
    %v567 = vld [vmem:[#allocation14 + $0x18] sm:$0xff]
    %v568 = vld [vmem:[#allocation14 + $0x20] sm:$0xff]
    %v569 = vld [vmem:[#allocation14 + $0x28] sm:$0xff]
    %v570 = vld [vmem:[#allocation14 + $0x30] sm:$0xff]
    %v571 = vld [vmem:[#allocation14 + $0x38] sm:$0xff]
    %v572 = vld [vmem:[#allocation14 + $0x40] sm:$0xff]
    %v573 = vld [vmem:[#allocation14 + $0x48] sm:$0xff]
    %v574 = vld [vmem:[#allocation14 + $0x50] sm:$0xff]
    %v575 = vld [vmem:[#allocation14 + $0x58] sm:$0xff]
    %v576 = vld [vmem:[#allocation14 + $0x60] sm:$0xff]
    %v577 = vld [vmem:[#allocation14 + $0x68] sm:$0xff]
    %v578 = vld [vmem:[#allocation14 + $0x70] sm:$0xff]
    %v579 = vld [vmem:[#allocation14 + $0x78] sm:$0xff]
    %580 = vmatprep.subr.mxu0 0.0
    %581 = vmatpush1.msra.mxu0 %v564
    %582 = vmatprep.subr.mxu0 0.0
    %583 = vmatpush1.msra.mxu0 %v565
    %584 = vmatprep.subr.mxu0 0.0
    %585 = vmatpush1.msra.mxu0 %v566
    %586 = vmatprep.subr.mxu0 0.0
    %587 = vmatpush1.msra.mxu0 %v567
    %588 = vmatprep.subr.mxu0 0.0
    %589 = vmatpush1.msra.mxu0 %v568
    %590 = vmatprep.subr.mxu0 0.0
    %591 = vmatpush1.msra.mxu0 %v569
    %592 = vmatprep.subr.mxu0 0.0
    %593 = vmatpush1.msra.mxu0 %v570
    %594 = vmatprep.subr.mxu0 0.0
    %595 = vmatpush1.msra.mxu0 %v571
    %596 = vmatprep.subr.mxu0 0.0
    %597 = vmatpush1.msra.mxu0 %v572
    %598 = vmatprep.subr.mxu0 0.0
    %599 = vmatpush1.msra.mxu0 %v573
    %600 = vmatprep.subr.mxu0 0.0
    %601 = vmatpush1.msra.mxu0 %v574
    %602 = vmatprep.subr.mxu0 0.0
    %603 = vmatpush1.msra.mxu0 %v575
    %604 = vmatprep.subr.mxu0 0.0
    %605 = vmatpush1.msra.mxu0 %v576
    %606 = vmatprep.subr.mxu0 0.0
    %607 = vmatpush1.msra.mxu0 %v577
    %608 = vmatprep.subr.mxu0 0.0
    %609 = vmatpush1.msra.mxu0 %v578
    %610 = vmatprep.subr.mxu0 0.0
    %611 = vmatpush1.msra.mxu0 %v579
    %612 = vmatprep.subr.mxu0 0.0
    %613 = vmatpush1.msra.mxu0 0.0
    %614 = vmatprep.subr.mxu0 0.0
    %615 = vmatpush1.msra.mxu0 0.0
    %616 = vmatprep.subr.mxu0 0.0
    %617 = vmatpush1.msra.mxu0 0.0
    %618 = vmatprep.subr.mxu0 0.0
    %619 = vmatpush1.msra.mxu0 0.0
    %620 = vmatprep.subr.mxu0 0.0
    %621 = vmatpush1.msra.mxu0 0.0
    %622 = vmatprep.subr.mxu0 0.0
    %623 = vmatpush1.msra.mxu0 0.0
    %624 = vmatprep.subr.mxu0 0.0
    %625 = vmatpush1.msra.mxu0 0.0
    %626 = vmatprep.subr.mxu0 0.0
    %627 = vmatpush1.msra.mxu0 0.0
    %628 = vmatprep.subr.mxu0 0.0
    %629 = vmatpush1.msra.mxu0 0.0
    %630 = vmatprep.subr.mxu0 0.0
    %631 = vmatpush1.msra.mxu0 0.0
    %632 = vmatprep.subr.mxu0 0.0
    %633 = vmatpush1.msra.mxu0 0.0
    %634 = vmatprep.subr.mxu0 0.0
    %635 = vmatpush1.msra.mxu0 0.0
    %636 = vmatprep.subr.mxu0 0.0
    %637 = vmatpush1.msra.mxu0 0.0
    %638 = vmatprep.subr.mxu0 0.0
    %639 = vmatpush1.msra.mxu0 0.0
    %640 = vmatprep.subr.mxu0 0.0
    %641 = vmatpush1.msra.mxu0 0.0
    %642 = vmatprep.subr.mxu0 0.0
    %643 = vmatpush1.msra.mxu0 0.0
    %644 = vmatprep.mubr.f32.mxu0 0.0
    %645 = vmatmul.mubr.f32.gmra.mrb[0].mxu0 %v563
    %v646 = vpop.f32.mrb[0].mxu0
    %v647 = vadd.f32 0.0, %v646
    %v648 = vpop.f32.mrb[0].mxu0
    %649 = vdwg.mxu0
    %650 = vmatprep.subr.mxu0 0.0
    %651 = vmatpush1.msra.mxu0 %v547
    %652 = vmatprep.subr.mxu0 0.0
    %653 = vmatpush1.msra.mxu0 %v548
    %654 = vmatprep.subr.mxu0 0.0
    %655 = vmatpush1.msra.mxu0 %v549
    %656 = vmatprep.subr.mxu0 0.0
    %657 = vmatpush1.msra.mxu0 %v550
    %658 = vmatprep.subr.mxu0 0.0
    %659 = vmatpush1.msra.mxu0 %v551
    %660 = vmatprep.subr.mxu0 0.0
    %661 = vmatpush1.msra.mxu0 %v552
    %662 = vmatprep.subr.mxu0 0.0
    %663 = vmatpush1.msra.mxu0 %v553
    %664 = vmatprep.subr.mxu0 0.0
    %665 = vmatpush1.msra.mxu0 %v554
    %666 = vmatprep.subr.mxu0 0.0
    %667 = vmatpush1.msra.mxu0 %v555
    %668 = vmatprep.subr.mxu0 0.0
    %669 = vmatpush1.msra.mxu0 %v556
    %670 = vmatprep.subr.mxu0 0.0
    %671 = vmatpush1.msra.mxu0 %v557
    %672 = vmatprep.subr.mxu0 0.0
    %673 = vmatpush1.msra.mxu0 %v558
    %674 = vmatprep.subr.mxu0 0.0
    %675 = vmatpush1.msra.mxu0 %v559
    %676 = vmatprep.subr.mxu0 0.0
    %677 = vmatpush1.msra.mxu0 %v560
    %678 = vmatprep.subr.mxu0 0.0
    %679 = vmatpush1.msra.mxu0 %v561
    %680 = vmatprep.subr.mxu0 0.0
    %681 = vmatpush1.msra.mxu0 %v562
    %682 = vmatprep.subr.mxu0 0.0
    %683 = vmatpush1.msra.mxu0 0.0
    %684 = vmatprep.subr.mxu0 0.0
    %685 = vmatpush1.msra.mxu0 0.0
    %686 = vmatprep.subr.mxu0 0.0
    %687 = vmatpush1.msra.mxu0 0.0
    %688 = vmatprep.subr.mxu0 0.0
    %689 = vmatpush1.msra.mxu0 0.0
    %690 = vmatprep.subr.mxu0 0.0
    %691 = vmatpush1.msra.mxu0 0.0
    %692 = vmatprep.subr.mxu0 0.0
    %693 = vmatpush1.msra.mxu0 0.0
    %694 = vmatprep.subr.mxu0 0.0
    %695 = vmatpush1.msra.mxu0 0.0
    %696 = vmatprep.subr.mxu0 0.0
    %697 = vmatpush1.msra.mxu0 0.0
    %698 = vmatprep.subr.mxu0 0.0
    %699 = vmatpush1.msra.mxu0 0.0
    %700 = vmatprep.subr.mxu0 0.0
    %701 = vmatpush1.msra.mxu0 0.0
    %702 = vmatprep.subr.mxu0 0.0
    %703 = vmatpush1.msra.mxu0 0.0
    %704 = vmatprep.subr.mxu0 0.0
    %705 = vmatpush1.msra.mxu0 0.0
    %706 = vmatprep.subr.mxu0 0.0
    %707 = vmatpush1.msra.mxu0 0.0
    %708 = vmatprep.subr.mxu0 0.0
    %709 = vmatpush1.msra.mxu0 0.0
    %710 = vmatprep.subr.mxu0 0.0
    %711 = vmatpush1.msra.mxu0 0.0
    %712 = vmatprep.subr.mxu0 0.0
    %713 = vmatpush1.msra.mxu0 0.0
    %714 = vmatprep.mubr.f32.mxu0 0.0
    %715 = vmatmul.mubr.f32.gmra.mrb[0].mxu0 %v545
    %v716 = vpop.f32.mrb[0].mxu0
    %v717 = vadd.f32 %v647, %v716
    %v718 = vpop.f32.mrb[0].mxu0
    %719 = vdwg.mxu0
    %v720 = vld [vmem:[%s11] sm:$0x1]
    %v722 = vlaneseq
    %v723 = vshrl.u32 %v722, 7
    %v724 = vsub.s32 0, %v723
    %v725 = vrot.slane %v720, %v724
    %v727 = vadd.f32 %v717, %v725
    %728 = vst [vmem:[#allocation15] sm:$0xff] %v727
    // Predicated region
    $region78: #{tpu_custom_call.1} parent=1 // pred_check
      _
    $region79: #{tpu_custom_call.1} parent=1 // pred_check_branch
      %730 = sbr.rel (0) target = $region81
    $region80: #{tpu_custom_call.1} parent=1 // pred_region
      %s732 = ssub.s32 128, 128
      %733 = vsyncadd [#allocation5], %s732
      %s735 = sshll.u32 [#allocation15], 4
      %s736 = int_to_ptr.vmem [resolvable:$true] %s735
      %738 = dma.vmem_to_hbm [thread:$0]  %s736, 128, %s12, [#allocation5]
    $region81: #{tpu_custom_call.1} parent=1 // pred_fallthru
      _
    // Predicated region
    $region82: #{tpu_custom_call.1} parent=1 // pred_check
      _
    $region83: #{tpu_custom_call.1} parent=1 // pred_check_branch
      %740 = sbr.rel (0) target = $region85
    $region84: #{tpu_custom_call.1} parent=1 // pred_region
      %s742 = ssub.s32 128, 128
      %743 = vsyncadd [#allocation17], %s742
      %s745 = sshll.u32 [#allocation16], 4
      %s746 = int_to_ptr.vmem [resolvable:$true] %s745
      %748 = dma.vmem_to_hbm [thread:$0]  %s746, 128, %s13, [#allocation17]
    $region85: #{tpu_custom_call.1} parent=1 // pred_fallthru
      _
    // Predicated region
    $region86: #{tpu_custom_call.1} parent=1 // pred_check
      _
    $region87: #{tpu_custom_call.1} parent=1 // pred_check_branch
      %750 = sbr.rel (0) target = $region89
    $region88: #{tpu_custom_call.1} parent=1 // pred_region
      %751 = dma.done [#allocation5], 128
    $region89: #{tpu_custom_call.1} parent=1 // pred_fallthru
      _
    // Predicated region
    $region90: #{tpu_custom_call.1} parent=1 // pred_check
      _
    $region91: #{tpu_custom_call.1} parent=1 // pred_check_branch
      %753 = sbr.rel (0) target = $region93
    $region92: #{tpu_custom_call.1} parent=1 // pred_region
      %754 = dma.done [#allocation17], 128
    $region93: #{tpu_custom_call.1} parent=1 // pred_fallthru
      _
    %755 = vsyncpa [#allocation4], 1
    %756 = vsyncpa [#allocation7], 1
    %757 = vsyncpa [#allocation10], 1
    %758 = vsyncpa [#allocation13], 1
    %759 = vsyncpa [#allocation5], 1
    %760 = vsyncpa [#allocation17], 1

</llo_original>
